<compile_context>
chip_gen: v7x
topology: tpu7x:2x2x1
jax: 0.10.0
libtpu: 0.0.40
codegen_flags: <defaults>
</compile_context>

<pallas_src>
import functools
from typing import NamedTuple, Optional

import jax
import jax.numpy as jnp
from jax.experimental import pallas as pl
from jax.experimental.pallas import tpu as pltpu


# ----------------------------------------------------------------------------
# helpers
# ----------------------------------------------------------------------------
def _round_up(x, m):
    return (x + m - 1) // m * m


def _vmem_capacity_bytes():
    try:
        info = pltpu.get_tpu_info()
        cap = getattr(info, "vmem_capacity_bytes", None)
        if cap:
            return int(cap)
    except Exception:
        pass
    return 64 << 20  # conservative default (v7x-sized)


def _choose_i_tile(i_pad, max_tile):
    """Largest 128-multiple that divides i_pad (itself a 128-multiple), <= max_tile."""
    if i_pad <= max_tile:
        return i_pad
    t = (max_tile // 128) * 128
    while t >= 128:
        if i_pad % t == 0:
            return t
        t -= 128
    return 128  # unreachable for 128-multiple i_pad


def _estimate_vmem(tT, tI, H, wsz, osz):
    return (2 * (H * 2 * tI * wsz      # fused [W1|W3]^T tile (double-buffered)
                 + tI * H * wsz        # W2^T tile
                 + tT * H * wsz        # x tile
                 + tT * 128 * 4        # gate tile (lane padded)
                 + tT * H * osz)       # output tile
            + tT * H * 4)              # f32 accumulator scratch


# ----------------------------------------------------------------------------
# Weight preparation (run ONCE at weight-load time, not per forward)
# ----------------------------------------------------------------------------
class JambaMoEWeights(NamedTuple):
    router_w: Optional[jnp.ndarray]   # (E, H) f32 (or None when E == 1)
    w13t: jnp.ndarray                 # (E, H, 2*I_pad) chunk-interleaved [W1|W3]^T
    w2t: jnp.ndarray                  # (E, I_pad, H)   W2^T
    num_experts: int
    hidden: int
    intermediate: int
    i_pad: int
    i_tile: int
    compute_dtype: object


def prepare_jamba_moe_weights(router_w, w13, w2, *, compute_dtype=jnp.bfloat16,
                              max_i_tile=None):
    E, two_I, H = w13.shape
    I = two_I // 2
    I_pad = _round_up(I, 128)

    vmem_cap = _vmem_capacity_bytes()
    if max_i_tile is None:
        max_i_tile = 1024 if vmem_cap >= (100 << 20) else 512
    tI = _choose_i_tile(I_pad, max_i_tile)
    nC = I_pad // tI

    w1 = w13[:, :I, :]
    w3 = w13[:, I:, :]
    if I_pad != I:
        pad = ((0, 0), (0, I_pad - I), (0, 0))
        w1 = jnp.pad(w1, pad)
        w3 = jnp.pad(w3, pad)
        w2 = jnp.pad(w2, ((0, 0), (0, 0), (0, I_pad - I)))

    # (E, H, I_pad) each, then interleave at chunk granularity so block c of
    # width 2*tI holds [W1 chunk c | W3 chunk c].
    w1t = jnp.transpose(w1, (0, 2, 1)).reshape(E, H, nC, tI)
    w3t = jnp.transpose(w3, (0, 2, 1)).reshape(E, H, nC, tI)
    w13t = jnp.stack([w1t, w3t], axis=3).reshape(E, H, 2 * I_pad).astype(compute_dtype)
    w2t = jnp.transpose(w2, (0, 2, 1)).astype(compute_dtype)               # (E, I_pad, H)

    rw = None if router_w is None else router_w.astype(jnp.float32)
    return JambaMoEWeights(rw, w13t, w2t, E, H, I, I_pad, tI,
                           jnp.dtype(compute_dtype))


# ----------------------------------------------------------------------------
# Fused-MoE expert kernel
#   grid = (token_tiles, schedule_len)
#   prefetch: sched_e (nT,S) int32, sched_c (nT,S) int32, n_valid (nT,) int32
#   x_ref    : (tT, H)          compute dtype
#   w13_ref  : (1, H, 2*tI)     [W1^T chunk | W3^T chunk]
#   w2_ref   : (1, tI, H)       W2^T chunk
#   g_ref    : (1, tT, 1) f32   dense gate (softmax prob or 0)
#   o_ref    : (tT, H)          output tile (resident over j)
#   acc_ref  : (tT, H) f32      accumulator scratch
# ----------------------------------------------------------------------------
def _moe_kernel(se_ref, sc_ref, nv_ref, x_ref, w13_ref, w2_ref, g_ref,
                o_ref, acc_ref):
    t = pl.program_id(0)
    j = pl.program_id(1)

    @pl.when(j == 0)
    def _init():
        acc_ref[...] = jnp.zeros_like(acc_ref)

    @pl.when(j < nv_ref[t])
    def _compute():
        x = x_ref[...]                                                    # (tT, H)
        gu = jnp.dot(x, w13_ref[0], preferred_element_type=jnp.float32)  # (tT, 2*tI)
        half = gu.shape[-1] // 2
        a = gu[:, :half]
        b = gu[:, half:]
        # gate folded into h so the accumulation is a plain add
        h = (jax.nn.silu(a) * b * g_ref[0]).astype(w2_ref.dtype)          # (tT, tI)
        acc_ref[...] += jnp.dot(h, w2_ref[0], preferred_element_type=jnp.float32)

    @pl.when(j == pl.num_programs(1) - 1)
    def _emit():
        o_ref[...] = acc_ref[...].astype(o_ref.dtype)


# ----------------------------------------------------------------------------
# Full JambaMoE forward
# ----------------------------------------------------------------------------
def jamba_moe_forward(hidden_states, weights: JambaMoEWeights, top_k, *,
                      token_tile=None, weight_buffers=2):
    orig_shape = hidden_states.shape
    orig_dtype = hidden_states.dtype
    H = weights.hidden
    E = weights.num_experts
    I_pad, tI = weights.i_pad, weights.i_tile
    nC = I_pad // tI
    cdt = weights.compute_dtype

    x = hidden_states.reshape(-1, H)
    T = x.shape[0]

    # ---- router + top-k routing glue (tiny; left to XLA) ----
    if E > 1 and weights.router_w is not None:
        logits = jnp.dot(x.astype(jnp.float32), weights.router_w.T)
    else:
        logits = jnp.ones((T, E), jnp.float32)
    probs = jax.nn.softmax(logits, axis=-1)
    k = int(min(top_k, E))
    topk_vals, topk_idx = jax.lax.top_k(probs, k)
    # dense gates: softmax prob for selected experts, 0 else (renormalize=False)
    gates = jnp.sum(jax.nn.one_hot(topk_idx, E, dtype=jnp.float32)
                    * topk_vals[..., None], axis=1)                       # (T, E)

    # ---- generation-aware tiling ----
    vmem_cap = _vmem_capacity_bytes()
    wsz = jnp.dtype(cdt).itemsize
    osz = jnp.dtype(orig_dtype).itemsize
    if token_tile is None:
        token_tile = 512 if vmem_cap >= (100 << 20) else 256
    tT = _round_up(min(token_tile, _round_up(T, 8)), 8)
    budget = max(vmem_cap - (16 << 20), 24 << 20)
    while _estimate_vmem(tT, tI, H, wsz, osz) > budget and tT > 8:
        tT = max(8, _round_up(tT // 2, 8))

    Tp = _round_up(T, tT)
    if Tp != T:
        x = jnp.pad(x, ((0, Tp - T), (0, 0)))
        gates = jnp.pad(gates, ((0, Tp - T), (0, 0)))
    nT = Tp // tT

    # ---- per-token-tile active-expert schedule (scalar prefetch) ----
    # Active experts first (in id order); padded slots repeat the last real
    # (expert, chunk) pair so the pipeline sees an unchanged block index and
    # elides the weight DMA; compute is skipped via n_valid.
    gtile = gates.reshape(nT, tT, E)
    active = gtile.max(axis=1) > 0.0                                       # (nT, E)
    num_active = jnp.sum(active, axis=1).astype(jnp.int32)                 # (nT,)
    e_ids = jnp.arange(E, dtype=jnp.int32)
    sort_key = jnp.where(active, e_ids[None, :], e_ids[None, :] + E)
    order = jnp.argsort(sort_key, axis=1).astype(jnp.int32)                # (nT, E)
    slots = int(min(E, tT * k))
    order = order[:, :slots]
    last = jnp.maximum(num_active - 1, 0)
    s_ids = jnp.broadcast_to(jnp.arange(slots, dtype=jnp.int32)[None, :], (nT, slots))
    order = jnp.take_along_axis(order, jnp.minimum(s_ids, last[:, None]), axis=1)
    order = jnp.where(num_active[:, None] > 0, order, 0)

    S = slots * nC
    sched_e = jnp.repeat(order, nC, axis=1).astype(jnp.int32)              # (nT, S)
    sched_c = jnp.broadcast_to(
        jnp.tile(jnp.arange(nC, dtype=jnp.int32), slots)[None, :], (nT, S))
    nvalid = (num_active * nC).astype(jnp.int32)                           # (nT,)
    pad_mask = jnp.arange(S, dtype=jnp.int32)[None, :] >= nvalid[:, None]
    sched_c = jnp.where(pad_mask, nC - 1, sched_c).astype(jnp.int32)

    x_c = x.astype(cdt)
    gates_t = gates.T.reshape(E, Tp, 1)                                    # (E, Tp, 1)

    # ---- VMEM limit (generation-aware) ----
    est = _estimate_vmem(tT, tI, H, wsz, osz)
    vmem_limit = int(max(est + (16 << 20), 48 << 20))
    vmem_limit = int(min(vmem_limit, max(vmem_cap - (8 << 20), est + (4 << 20))))

    # Optional deeper weight buffering (sweepable on 128 MiB parts).
    w_kwargs = {} if weight_buffers == 2 else {"pipeline_mode": pl.Buffered(weight_buffers)}

    out = pl.pallas_call(
        _moe_kernel,
        out_shape=jax.ShapeDtypeStruct((Tp, H), orig_dtype),
        grid_spec=pltpu.PrefetchScalarGridSpec(
            num_scalar_prefetch=3,
            grid=(nT, S),
            in_specs=[
                pl.BlockSpec((tT, H),
                             lambda t, j, se, sc, nv: (t, 0)),                   # x
                pl.BlockSpec((1, H, 2 * tI),
                             lambda t, j, se, sc, nv: (se[t, j], 0, sc[t, j]),
                             **w_kwargs),                                        # [W1|W3]^T
                pl.BlockSpec((1, tI, H),
                             lambda t, j, se, sc, nv: (se[t, j], sc[t, j], 0),
                             **w_kwargs),                                        # W2^T
                pl.BlockSpec((1, tT, 1),
                             lambda t, j, se, sc, nv: (se[t, j], t, 0)),         # gates
            ],
            out_specs=pl.BlockSpec((tT, H), lambda t, j, se, sc, nv: (t, 0)),
            scratch_shapes=[pltpu.VMEM((tT, H), jnp.float32)],
        ),
        compiler_params=pltpu.CompilerParams(
            dimension_semantics=("parallel", "arbitrary"),
            vmem_limit_bytes=vmem_limit,
        ),
    )(sched_e, sched_c, nvalid, x_c, weights.w13t, weights.w2t, gates_t)

    return out[:T].reshape(orig_shape)


# ----------------------------------------------------------------------------
# Pure-JAX reference (correctness check only)
# ----------------------------------------------------------------------------
def jamba_moe_reference(hidden_states, router_w, w13, w2, top_k):
    orig_shape = hidden_states.shape
    H = orig_shape[-1]
    x = hidden_states.reshape(-1, H).astype(jnp.float32)
    E, two_I, _ = w13.shape
    I = two_I // 2

    logits = x @ router_w.astype(jnp.float32).T if E > 1 else jnp.ones(
        (x.shape[0], 1), jnp.float32)
    probs = jax.nn.softmax(logits, axis=-1)
    topk_vals, topk_idx = jax.lax.top_k(probs, min(top_k, E))
    gates = jnp.sum(jax.nn.one_hot(topk_idx, E, dtype=jnp.float32)
                    * topk_vals[..., None], axis=1)

    out = jnp.zeros_like(x)
    for e in range(E):
        gu = x @ w13[e].astype(jnp.float32).T
        h = jax.nn.silu(gu[:, :I]) * gu[:, I:]
        y = h @ w2[e].astype(jnp.float32).T
        out = out + gates[:, e:e + 1] * y
    return out.reshape(orig_shape).astype(hidden_states.dtype)


if __name__ == "__main__":
    def run_case(batch, seq, hidden, intermediate, num_experts, top_k,
                 compute_dtype, tol):
        key = jax.random.PRNGKey(0)
        k_x, k_r, k_w13, k_w2 = jax.random.split(key, 4)
        hs = jax.random.normal(k_x, (batch, seq, hidden), jnp.float32)
        router_w = 0.02 * jax.random.normal(k_r, (num_experts, hidden), jnp.float32)
        w13 = 0.02 * jax.random.normal(
            k_w13, (num_experts, 2 * intermediate, hidden), jnp.float32)
        w2 = 0.02 * jax.random.normal(
            k_w2, (num_experts, hidden, intermediate), jnp.float32)

        ref = jamba_moe_reference(hs, router_w, w13, w2, top_k)
        scale = float(jnp.max(jnp.abs(ref))) + 1e-6

        weights = prepare_jamba_moe_weights(router_w, w13, w2,
                                            compute_dtype=compute_dtype)
        out = jamba_moe_forward(hs, weights, top_k)
        out = jax.block_until_ready(out)
        assert out.shape == hs.shape
        err = float(jnp.max(jnp.abs(out.astype(jnp.float32) - ref.astype(jnp.float32))))
        assert err / scale < tol, (
            f"mismatch (E={num_experts}, I={intermediate}, dt={compute_dtype}): "
            f"rel={err / scale:.3e}")

    # 1) f32 compute path: tight structural check (routing, schedule, accumulation).
    run_case(2, 9, 128, 256, 8, 2, jnp.float32, 1e-4)
    # 2) bf16 production path: loose tolerance for rounding.
    run_case(2, 9, 128, 256, 8, 2, jnp.bfloat16, 3e-2)
    # 3) non-128-multiple intermediate (exercises I padding guard) + top_k=1.
    run_case(2, 9, 128, 320, 4, 1, jnp.float32, 1e-4)

    print("KERNEL_OK")
</pallas_src>

<mosaic_0001>
module attributes {stable_mosaic.version = 11 : i64} {
  func.func @_moe_kernel(%arg0: i32, %arg1: i32, %arg2: memref<1x8xi32, #tpu.memory_space<smem>>, %arg3: memref<1x8xi32, #tpu.memory_space<smem>>, %arg4: memref<1xi32, #tpu.memory_space<smem>>, %arg5: memref<24x128xf32, #tpu.memory_space<vmem>>, %arg6: memref<1x128x512xf32, #tpu.memory_space<vmem>>, %arg7: memref<1x256x128xf32, #tpu.memory_space<vmem>>, %arg8: memref<1x24x1xf32, #tpu.memory_space<vmem>>, %arg9: memref<24x128xf32, #tpu.memory_space<vmem>>, %arg10: memref<24x128xf32, #tpu.memory_space<vmem>>) attributes {dimension_semantics = [#tpu.dimension_semantics<parallel>, #tpu.dimension_semantics<arbitrary>], iteration_bounds = array<i64: 1, 8>, scalar_prefetch = 3 : i64, scratch_operands = 1 : i64, tpu.core_type = #tpu.core_type<tc>, window_params = [{transform_indices = @transform_0, window_bounds = array<i64: 24, 128>}, {transform_indices = @transform_1, window_bounds = array<i64: 1, 128, 512>}, {transform_indices = @transform_2, window_bounds = array<i64: 1, 256, 128>}, {transform_indices = @transform_3, window_bounds = array<i64: 1, 24, 1>}, {transform_indices = @transform_4, window_bounds = array<i64: 24, 128>}]} {
    %c0_i32 = arith.constant 0 : i32
    %0 = arith.cmpi eq, %arg1, %c0_i32 : i32
    %1 = arith.extui %0 : i1 to i32
    %c0_i32_0 = arith.constant 0 : i32
    %2 = arith.cmpi ne, %1, %c0_i32_0 : i32
    scf.if %2 {
      %cst = arith.constant 0.000000e+00 : f32
      %11 = vector.broadcast %cst : f32 to vector<24x128xf32>
      %c0 = arith.constant 0 : index
      %c0_3 = arith.constant 0 : index
      %12 = vector.load %arg10[%c0, %c0_3] : memref<24x128xf32, #tpu.memory_space<vmem>>, vector<24x128xf32>
      tpu.vector_store %arg10[%c0, %c0_3], %11 {strides = array<i32>} : memref<24x128xf32, #tpu.memory_space<vmem>>, vector<24x128xf32>,
    } else {
    }
    %3 = arith.index_cast %arg0 : i32 to index
    %4 = memref.load %arg4[%3] : memref<1xi32, #tpu.memory_space<smem>>
    %5 = arith.cmpi slt, %arg1, %4 : i32
    %6 = arith.extui %5 : i1 to i32
    %c0_i32_1 = arith.constant 0 : i32
    %7 = arith.cmpi ne, %6, %c0_i32_1 : i32
    scf.if %7 {
      %c0 = arith.constant 0 : index
      %c0_3 = arith.constant 0 : index
      %11 = vector.load %arg5[%c0, %c0_3] : memref<24x128xf32, #tpu.memory_space<vmem>>, vector<24x128xf32>
      %c0_4 = arith.constant 0 : index
      %c0_5 = arith.constant 0 : index
      %c0_6 = arith.constant 0 : index
      %12 = vector.load %arg6[%c0_4, %c0_5, %c0_6] : memref<1x128x512xf32, #tpu.memory_space<vmem>>, vector<1x128x512xf32>
      %13 = vector.shape_cast %12 : vector<1x128x512xf32> to vector<128x512xf32>
      %cst = arith.constant dense<0.000000e+00> : vector<24x512xf32>
      %14 = tpu.matmul %11, %13, %cst {dimension_numbers = #tpu.dot_dimension_numbers<[1], [0], [0], [1], [0, 0, 1, 1], [], []>} : vector<24x128xf32>, vector<128x512xf32>, vector<24x512xf32> -> vector<24x512xf32>
      %15 = vector.extract_strided_slice %14 {offsets = [0, 0], sizes = [24, 256], strides = [1, 1]} : vector<24x512xf32> to vector<24x256xf32>
      %16 = vector.extract_strided_slice %14 {offsets = [0, 256], sizes = [24, 256], strides = [1, 1]} : vector<24x512xf32> to vector<24x256xf32>
      %17 = arith.negf %15 : vector<24x256xf32>
      %18 = math.exp %17 : vector<24x256xf32>
      %cst_7 = arith.constant 1.000000e+00 : f32
      %19 = vector.broadcast %cst_7 : f32 to vector<24x256xf32>
      %20 = arith.addf %19, %18 : vector<24x256xf32>
      %21 = arith.divf %19, %20 : vector<24x256xf32>
      %22 = arith.mulf %15, %21 : vector<24x256xf32>
      %23 = arith.mulf %22, %16 : vector<24x256xf32>
      %c0_8 = arith.constant 0 : index
      %c0_9 = arith.constant 0 : index
      %c0_10 = arith.constant 0 : index
      %24 = vector.load %arg8[%c0_8, %c0_9, %c0_10] : memref<1x24x1xf32, #tpu.memory_space<vmem>>, vector<1x24x1xf32>
      %25 = vector.shape_cast %24 : vector<1x24x1xf32> to vector<24x1xf32>
      %26 = vector.broadcast %25 : vector<24x1xf32> to vector<24x256xf32>
      %27 = arith.mulf %23, %26 : vector<24x256xf32>
      %c0_11 = arith.constant 0 : index
      %c0_12 = arith.constant 0 : index
      %28 = vector.load %arg10[%c0_11, %c0_12] : memref<24x128xf32, #tpu.memory_space<vmem>>, vector<24x128xf32>
      %c0_13 = arith.constant 0 : index
      %c0_14 = arith.constant 0 : index
      %c0_15 = arith.constant 0 : index
      %29 = vector.load %arg7[%c0_13, %c0_14, %c0_15] : memref<1x256x128xf32, #tpu.memory_space<vmem>>, vector<1x256x128xf32>
      %30 = vector.shape_cast %29 : vector<1x256x128xf32> to vector<256x128xf32>
      %cst_16 = arith.constant dense<0.000000e+00> : vector<24x128xf32>
      %31 = tpu.matmul %27, %30, %cst_16 {dimension_numbers = #tpu.dot_dimension_numbers<[1], [0], [0], [1], [0, 0, 1, 1], [], []>} : vector<24x256xf32>, vector<256x128xf32>, vector<24x128xf32> -> vector<24x128xf32>
      %32 = arith.addf %28, %31 : vector<24x128xf32>
      %c0_17 = arith.constant 0 : index
      %c0_18 = arith.constant 0 : index
      %33 = vector.load %arg10[%c0_17, %c0_18] : memref<24x128xf32, #tpu.memory_space<vmem>>, vector<24x128xf32>
      tpu.vector_store %arg10[%c0_17, %c0_18], %32 {strides = array<i32>} : memref<24x128xf32, #tpu.memory_space<vmem>>, vector<24x128xf32>,
    } else {
    }
    %c7_i32 = arith.constant 7 : i32
    %8 = arith.cmpi eq, %arg1, %c7_i32 : i32
    %9 = arith.extui %8 : i1 to i32
    %c0_i32_2 = arith.constant 0 : i32
    %10 = arith.cmpi ne, %9, %c0_i32_2 : i32
    scf.if %10 {
      %c0 = arith.constant 0 : index
      %c0_3 = arith.constant 0 : index
      %11 = vector.load %arg10[%c0, %c0_3] : memref<24x128xf32, #tpu.memory_space<vmem>>, vector<24x128xf32>
      %c0_4 = arith.constant 0 : index
      %c0_5 = arith.constant 0 : index
      %12 = vector.load %arg9[%c0_4, %c0_5] : memref<24x128xf32, #tpu.memory_space<vmem>>, vector<24x128xf32>
      tpu.vector_store %arg9[%c0_4, %c0_5], %11 {strides = array<i32>} : memref<24x128xf32, #tpu.memory_space<vmem>>, vector<24x128xf32>,
    } else {
    }
    return
  }
  func.func @transform_0(%arg0: i32, %arg1: i32, %arg2: memref<1x8xi32, #tpu.memory_space<smem>>, %arg3: memref<1x8xi32, #tpu.memory_space<smem>>, %arg4: memref<1xi32, #tpu.memory_space<smem>>) -> (i32, i32) {
    %c0_i32 = arith.constant 0 : i32
    %c0_i32_0 = arith.constant 0 : i32
    return %arg0, %c0_i32 : i32, i32
  }
  func.func @transform_1(%arg0: i32, %arg1: i32, %arg2: memref<1x8xi32, #tpu.memory_space<smem>>, %arg3: memref<1x8xi32, #tpu.memory_space<smem>>, %arg4: memref<1xi32, #tpu.memory_space<smem>>) -> (i32, i32, i32) {
    %0 = arith.index_cast %arg0 : i32 to index
    %1 = arith.index_cast %arg1 : i32 to index
    %2 = memref.load %arg2[%0, %1] : memref<1x8xi32, #tpu.memory_space<smem>>
    %3 = arith.index_cast %arg0 : i32 to index
    %4 = arith.index_cast %arg1 : i32 to index
    %5 = memref.load %arg3[%3, %4] : memref<1x8xi32, #tpu.memory_space<smem>>
    %c0_i32 = arith.constant 0 : i32
    %c0_i32_0 = arith.constant 0 : i32
    return %2, %c0_i32, %5 : i32, i32, i32
  }
  func.func @transform_2(%arg0: i32, %arg1: i32, %arg2: memref<1x8xi32, #tpu.memory_space<smem>>, %arg3: memref<1x8xi32, #tpu.memory_space<smem>>, %arg4: memref<1xi32, #tpu.memory_space<smem>>) -> (i32, i32, i32) {
    %0 = arith.index_cast %arg0 : i32 to index
    %1 = arith.index_cast %arg1 : i32 to index
    %2 = memref.load %arg2[%0, %1] : memref<1x8xi32, #tpu.memory_space<smem>>
    %3 = arith.index_cast %arg0 : i32 to index
    %4 = arith.index_cast %arg1 : i32 to index
    %5 = memref.load %arg3[%3, %4] : memref<1x8xi32, #tpu.memory_space<smem>>
    %c0_i32 = arith.constant 0 : i32
    %c0_i32_0 = arith.constant 0 : i32
    return %2, %5, %c0_i32 : i32, i32, i32
  }
  func.func @transform_3(%arg0: i32, %arg1: i32, %arg2: memref<1x8xi32, #tpu.memory_space<smem>>, %arg3: memref<1x8xi32, #tpu.memory_space<smem>>, %arg4: memref<1xi32, #tpu.memory_space<smem>>) -> (i32, i32, i32) {
    %0 = arith.index_cast %arg0 : i32 to index
    %1 = arith.index_cast %arg1 : i32 to index
    %2 = memref.load %arg2[%0, %1] : memref<1x8xi32, #tpu.memory_space<smem>>
    %c0_i32 = arith.constant 0 : i32
    %c0_i32_0 = arith.constant 0 : i32
    return %2, %arg0, %c0_i32 : i32, i32, i32
  }
  func.func @transform_4(%arg0: i32, %arg1: i32, %arg2: memref<1x8xi32, #tpu.memory_space<smem>>, %arg3: memref<1x8xi32, #tpu.memory_space<smem>>, %arg4: memref<1xi32, #tpu.memory_space<smem>>) -> (i32, i32) {
    %c0_i32 = arith.constant 0 : i32
    %c0_i32_0 = arith.constant 0 : i32
    return %arg0, %c0_i32 : i32, i32
  }
}

</mosaic_0001>

<llo_original>
// kernel: tpu_custom_call.1
$region0: #{tpu_custom_call.1}
  #allocation0 [shape = 'u32[]', space=smem, size = 0x4, offset = 0x4, fixed_abs, tag = 'smem constant byte address 0x4 - core index']
  #allocation1 [shape = 'u32[144,128]{1,0:T(1,128)}', space=vmem, size = 0x12000, scoped, tag = 'internal scratch']
  #allocation2 [shape = 'f32[24,128]{1,0:T(8,128)}', space=vmem, size = 0x3000, scoped, tag = 'scratch operand']
  #allocation3 [shape = 's32[1]{0}', space=sflag, size = 0x4, scoped, tag = 'scoped memory for tpu_custom_call.1']
  #allocation4 [shape = 'u8[512]{0}', space=smem, size = 0x200, scoped, tag = 'prefetched SMEM operand 0']
  #allocation5 [shape = 'u8[512]{0}', space=smem, size = 0x200, scoped, tag = 'prefetched SMEM operand 1']
  #allocation6 [shape = 's32[1]{0:T(128)S(6)}', space=smem, size = 0x200, scoped, tag = 'prefetched SMEM operand 2']
  %s0 = inlined_call_operand.hbm [shape: s32[1,8], index: 0, kind: input, shape index: {}]
  %s1 = inlined_call_operand.hbm [shape: s32[1,8], index: 1, kind: input, shape index: {}]
  %s2 = inlined_call_operand.<no memory space> [shape: s32[1], index: 2, kind: input, shape index: {}]
  %s3 = inlined_call_operand.hbm [shape: f32[24,128], index: 3, kind: input, shape index: {}]
  %s4 = inlined_call_operand.hbm [shape: f32[8,128,512], index: 4, kind: input, shape index: {}]
  %s5 = inlined_call_operand.hbm [shape: f32[8,256,128], index: 5, kind: input, shape index: {}]
  %s6 = inlined_call_operand.vmem [shape: f32[8,24,1], index: 6, kind: input, shape index: {}]
  %s7 = inlined_call_operand.hbm [shape: f32[24,128], index: 7, kind: output, shape index: {}]
  %s8 = sld [smem:[#allocation0]]
  $region73: #{tpu_custom_call.1} parent=0
    _
  %s10 = ssub.s32 1, %s8
  %s11 = scalar_select 0, %s10, %s8
  %13 = dma.hbm_to_smem %s0, 16, [#allocation4], [#allocation3]
  %15 = dma.hbm_to_smem %s1, 16, [#allocation5], [#allocation3]
  %16 = sst [smem:[#allocation6]] %s2
  %17 = dma.done [#allocation3], 32
  %18 = sfence
  $region1: #{tpu_custom_call.1} parent=0
    #allocation7 [shape = 'u8[12288]{0}', space=vmem, size = 0x3000, scoped, tag = 'input window, operand 3, single buffered']
    #allocation8 [shape = 's32[2]{0}', space=sflag, size = 0x8, scoped, tag = 'scoped memory for tpu_custom_call.1']
    #allocation9 [shape = 's32[2]{0}', space=sflag, size = 0x8, scoped, tag = 'scoped memory for tpu_custom_call.1']
    #allocation10 [shape = 'u8[524288]{0}', space=vmem, size = 0x80000, scoped, tag = 'input window, operand 4']
    #allocation11 [shape = 's32[2]{0}', space=sflag, size = 0x8, scoped, tag = 'scoped memory for tpu_custom_call.1']
    #allocation12 [shape = 'u8[262144]{0}', space=vmem, size = 0x40000, scoped, tag = 'input window, operand 5']
    #allocation13 [shape = 'u8[12288]{0}', space=vmem, size = 0x3000, scoped, tag = 'output window, operand 0, single buffered']
    %19 = vsyncpa [#allocation8], 0
    %20 = vsyncpa [#allocation11], 0
    %s21 = scalar_lea.sflag [#allocation11], 1
    %22 = vsyncpa %s21, 0
    %23 = vsyncpa [#allocation9], 0
    loop: start=0, step=1, limit=10
    $region2: #{tpu_custom_call.1} parent=1 // loop_pre_header
      _
    $region3: #{tpu_custom_call.1} parent=1 // loop_header
      %s25 = sphi 0, %s29
      %p26 = scmp.ge.s32.totalorder %s25, 10
      %s32 = sphi 0, %s44
      %s33 = sphi 0, %s40
      %s34 = sphi 0, %s32
      %s35 = sphi 0, %s33
      %s36 = sphi 0, %s34
      %s37 = sphi 0, %s35
      %s47 = sphi 0, %s49
      %s50 = sphi 0, %s47
      %s51 = sphi 0, %s50
      %s67 = sphi 0, %s51
      %s93 = sphi 0, %s95
      %s96 = sphi 0, %s93
      %s97 = sphi 0, %s96
      %s113 = sphi 0, %s97
      %s139 = sphi 0, %s141
      %s142 = sphi 0, %s139
      %s143 = sphi 0, %s142
      %s159 = sphi 0, %s143
      %s183 = sphi 0, %s185
      %s186 = sphi 0, %s183
      %s187 = sphi 0, %s186
      %s203 = sphi 0, %s187
      %s209 = sphi 0, %s211
      %s212 = sphi 0, %s209
      %s213 = sphi 0, %s212
      %s229 = sphi 0, %s213
    $region4: #{tpu_custom_call.1} parent=1 // loop_header_branch
      %28 = sbr.rel (%p26) target = $region8
    $region5: #{tpu_custom_call.1} parent=1 // loop_body
      %s30 = ssub.s32 %s25, 1
      %s31 = ssub.s32 %s25, 2
      %s38 = sadd.s32 1, %s33
      %p39 = scmp.ge.s32.totalorder %s38, 8
      %s40 = scalar_select %p39, 0, %s38
      %s41 = sadd.s32 1, %s32
      %s42 = scalar_select %p39, %s41, %s32
      %p43 = scmp.ge.s32.totalorder %s42, 1
      %s44 = scalar_select %p43, 0, %s42
      %s45 = ssub.s32 %s32, %s44
      %p46 = scmp.eq.s32.totalorder %s45, 0
      %s48 = sadd.s32 %s47, 1
      %s49 = scalar_select %p46, %s47, %s48
      %p52 = pneg %p46
      %p53 = scmp.eq.s32.totalorder %s25, 7
      %p54 = por %p52, %p53
      %p55 = scmp.ne.s32.totalorder %s47, %s50
      %p56 = scmp.eq.s32.totalorder %s25, 0
      %p57 = por %p55, %p56
      %p58 = scmp.ne.s32.totalorder %s47, %s50
      %p59 = scmp.eq.s32.totalorder %s30, 7
      %p60 = por %p58, %p59
      %p61 = scmp.ne.s32.totalorder %s50, %s51
      %p62 = scmp.eq.s32.totalorder %s30, 0
      %p63 = por %p61, %p62
      %p64 = scmp.ne.s32.totalorder %s50, %s51
      %p65 = scmp.eq.s32.totalorder %s31, 7
      %p66 = por %p64, %p65
      %p68 = scmp.ne.s32.totalorder %s51, %s67
      %p69 = scmp.eq.s32.totalorder %s31, 0
      %p70 = por %p68, %p69
      %s71 = sshra.s32 %s33, 7
      %s72 = sand.u32 %s33, 127
      %s73 = sadd.s32 %s71, %s32
      %s74 = smul.u32 %s73, 128
      %s75 = sshra.s32 %s33, 7
      %s76 = sand.u32 %s33, 127
      %s77 = sadd.s32 %s74, %s76
      %s78 = sld [smem:[#allocation4 + %s77]]
      %s79 = sld [smem:[#allocation5 + %s77]]
      %s80 = sshra.s32 %s40, 7
      %s81 = sand.u32 %s40, 127
      %s82 = sadd.s32 %s80, %s44
      %s83 = smul.u32 %s82, 128
      %s84 = sshra.s32 %s40, 7
      %s85 = sand.u32 %s40, 127
      %s86 = sadd.s32 %s83, %s85
      %s87 = sld [smem:[#allocation4 + %s86]]
      %s88 = sld [smem:[#allocation5 + %s86]]
      %s89 = ssub.s32 %s78, %s87
      %s90 = ssub.s32 %s79, %s88
      %s91 = sor.u32 %s89, %s90
      %p92 = scmp.eq.s32.totalorder %s91, 0
      %s94 = sadd.s32 %s93, 1
      %s95 = scalar_select %p92, %s93, %s94
      %p98 = pneg %p92
      %p99 = scmp.eq.s32.totalorder %s25, 7
      %p100 = por %p98, %p99
      %p101 = scmp.ne.s32.totalorder %s93, %s96
      %p102 = scmp.eq.s32.totalorder %s25, 0
      %p103 = por %p101, %p102
      %p104 = scmp.ne.s32.totalorder %s93, %s96
      %p105 = scmp.eq.s32.totalorder %s30, 7
      %p106 = por %p104, %p105
      %p107 = scmp.ne.s32.totalorder %s96, %s97
      %p108 = scmp.eq.s32.totalorder %s30, 0
      %p109 = por %p107, %p108
      %p110 = scmp.ne.s32.totalorder %s96, %s97
      %p111 = scmp.eq.s32.totalorder %s31, 7
      %p112 = por %p110, %p111
      %p114 = scmp.ne.s32.totalorder %s97, %s113
      %p115 = scmp.eq.s32.totalorder %s31, 0
      %p116 = por %p114, %p115
      %s117 = sshra.s32 %s33, 7
      %s118 = sand.u32 %s33, 127
      %s119 = sadd.s32 %s117, %s32
      %s120 = smul.u32 %s119, 128
      %s121 = sshra.s32 %s33, 7
      %s122 = sand.u32 %s33, 127
      %s123 = sadd.s32 %s120, %s122
      %s124 = sld [smem:[#allocation4 + %s123]]
      %s125 = sld [smem:[#allocation5 + %s123]]
      %s126 = sshra.s32 %s40, 7
      %s127 = sand.u32 %s40, 127
      %s128 = sadd.s32 %s126, %s44
      %s129 = smul.u32 %s128, 128
      %s130 = sshra.s32 %s40, 7
      %s131 = sand.u32 %s40, 127
      %s132 = sadd.s32 %s129, %s131
      %s133 = sld [smem:[#allocation4 + %s132]]
      %s134 = sld [smem:[#allocation5 + %s132]]
      %s135 = ssub.s32 %s124, %s133
      %s136 = ssub.s32 %s125, %s134
      %s137 = sor.u32 %s135, %s136
      %p138 = scmp.eq.s32.totalorder %s137, 0
      %s140 = sadd.s32 %s139, 1
      %s141 = scalar_select %p138, %s139, %s140
      %p144 = pneg %p138
      %p145 = scmp.eq.s32.totalorder %s25, 7
      %p146 = por %p144, %p145
      %p147 = scmp.ne.s32.totalorder %s139, %s142
      %p148 = scmp.eq.s32.totalorder %s25, 0
      %p149 = por %p147, %p148
      %p150 = scmp.ne.s32.totalorder %s139, %s142
      %p151 = scmp.eq.s32.totalorder %s30, 7
      %p152 = por %p150, %p151
      %p153 = scmp.ne.s32.totalorder %s142, %s143
      %p154 = scmp.eq.s32.totalorder %s30, 0
      %p155 = por %p153, %p154
      %p156 = scmp.ne.s32.totalorder %s142, %s143
      %p157 = scmp.eq.s32.totalorder %s31, 7
      %p158 = por %p156, %p157
      %p160 = scmp.ne.s32.totalorder %s143, %s159
      %p161 = scmp.eq.s32.totalorder %s31, 0
      %p162 = por %p160, %p161
      %s163 = sshra.s32 %s33, 7
      %s164 = sand.u32 %s33, 127
      %s165 = sadd.s32 %s163, %s32
      %s166 = smul.u32 %s165, 128
      %s167 = sshra.s32 %s33, 7
      %s168 = sand.u32 %s33, 127
      %s169 = sadd.s32 %s166, %s168
      %s170 = sld [smem:[#allocation4 + %s169]]
      %s171 = sshra.s32 %s40, 7
      %s172 = sand.u32 %s40, 127
      %s173 = sadd.s32 %s171, %s44
      %s174 = smul.u32 %s173, 128
      %s175 = sshra.s32 %s40, 7
      %s176 = sand.u32 %s40, 127
      %s177 = sadd.s32 %s174, %s176
      %s178 = sld [smem:[#allocation4 + %s177]]
      %s179 = ssub.s32 %s170, %s178
      %s180 = ssub.s32 %s32, %s44
      %s181 = sor.u32 %s179, %s180
      %p182 = scmp.eq.s32.totalorder %s181, 0
      %s184 = sadd.s32 %s183, 1
      %s185 = scalar_select %p182, %s183, %s184
      %p188 = pneg %p182
      %p189 = scmp.eq.s32.totalorder %s25, 7
      %p190 = por %p188, %p189
      %p191 = scmp.ne.s32.totalorder %s183, %s186
      %p192 = scmp.eq.s32.totalorder %s25, 0
      %p193 = por %p191, %p192
      %p194 = scmp.ne.s32.totalorder %s183, %s186
      %p195 = scmp.eq.s32.totalorder %s30, 7
      %p196 = por %p194, %p195
      %p197 = scmp.ne.s32.totalorder %s186, %s187
      %p198 = scmp.eq.s32.totalorder %s30, 0
      %p199 = por %p197, %p198
      %p200 = scmp.ne.s32.totalorder %s186, %s187
      %p201 = scmp.eq.s32.totalorder %s31, 7
      %p202 = por %p200, %p201
      %p204 = scmp.ne.s32.totalorder %s187, %s203
      %p205 = scmp.eq.s32.totalorder %s31, 0
      %p206 = por %p204, %p205
      %s207 = ssub.s32 %s32, %s44
      %p208 = scmp.eq.s32.totalorder %s207, 0
      %s210 = sadd.s32 %s209, 1
      %s211 = scalar_select %p208, %s209, %s210
      %p214 = pneg %p208
      %p215 = scmp.eq.s32.totalorder %s25, 7
      %p216 = por %p214, %p215
      %p217 = scmp.ne.s32.totalorder %s209, %s212
      %p218 = scmp.eq.s32.totalorder %s25, 0
      %p219 = por %p217, %p218
      %p220 = scmp.ne.s32.totalorder %s209, %s212
      %p221 = scmp.eq.s32.totalorder %s30, 7
      %p222 = por %p220, %p221
      %p223 = scmp.ne.s32.totalorder %s212, %s213
      %p224 = scmp.eq.s32.totalorder %s30, 0
      %p225 = por %p223, %p224
      %p226 = scmp.ne.s32.totalorder %s212, %s213
      %p227 = scmp.eq.s32.totalorder %s31, 7
      %p228 = por %p226, %p227
      %p230 = scmp.ne.s32.totalorder %s213, %s229
      %p231 = scmp.eq.s32.totalorder %s31, 0
      %p232 = por %p230, %p231
      %p233 = scmp.le.s32.totalorder 1, %s25
      %p234 = scmp.lt.s32.totalorder %s25, 9
      %p235 = pnand %p233, %p234
      %p236 = pneg %p235
      // Predicated region
      $region9: #{tpu_custom_call.1} parent=5 // pred_check
        _
      $region10: #{tpu_custom_call.1} parent=5 // pred_check_branch
        %238 = sbr.rel (%p235) target = $region12
      $region11: #{tpu_custom_call.1} parent=5 // pred_region
        %s239 = ssub.s32 %s25, 1
        // Predicated region
        $region13: #{tpu_custom_call.1} parent=11 // pred_check
          %p240 = pneg %p63
        $region14: #{tpu_custom_call.1} parent=11 // pred_check_branch
          %242 = sbr.rel (%p240) target = $region16
        $region15: #{tpu_custom_call.1} parent=11 // pred_region
          %s243 = smul.u32 3, %s34
          %s245 = ssub.s32 384, 384
          %246 = vsyncadd [#allocation8], %s245
          %s247 = smul.addr %s243, 128
          %s248 = scalar_lea.hbm %s3, %s247
          %s249 = sshll.u32 [#allocation7], 4
          %s250 = int_to_ptr.vmem [resolvable:$true] %s249
          %255 = dma.hbm_to_vmem [thread:$0]  %s248, 384, %s250, [#allocation8], 128, 128, 8
        $region16: #{tpu_custom_call.1} parent=11 // pred_fallthru
          _
      $region12: #{tpu_custom_call.1} parent=5 // pred_fallthru
        _
      %p256 = scmp.lt.s32.totalorder %s25, 8
      // Predicated region
      $region17: #{tpu_custom_call.1} parent=5 // pred_check
        %p257 = pneg %p256
      $region18: #{tpu_custom_call.1} parent=5 // pred_check_branch
        %259 = sbr.rel (%p257) target = $region20
      $region19: #{tpu_custom_call.1} parent=5 // pred_region
        // Predicated region
        $region21: #{tpu_custom_call.1} parent=19 // pred_check
          %p260 = pneg %p103
        $region22: #{tpu_custom_call.1} parent=19 // pred_check_branch
          %262 = sbr.rel (%p260) target = $region24
        $region23: #{tpu_custom_call.1} parent=19 // pred_region
          %s263 = sand.u32 %s25, 1
          %s264 = scalar_lea.sflag [#allocation11], %s263
          %s265 = sand.u32 %s93, 1
          %s266 = smul.addr %s265, 512
          %s267 = scalar_lea.vmem [#allocation10], %s266
          %s268 = sshra.s32 %s33, 7
          %s269 = sand.u32 %s33, 127
          %s270 = sadd.s32 %s268, %s32
          %s271 = smul.u32 %s270, 128
          %s272 = sshra.s32 %s33, 7
          %s273 = sand.u32 %s33, 127
          %s274 = sadd.s32 %s271, %s273
          %s275 = sld [smem:[#allocation4 + %s274]]
          %s276 = sld [smem:[#allocation5 + %s274]]
          %s277 = smul.u32 4, %s276
          %s279 = ssub.s32 8192, 8192
          %280 = vsyncadd %s264, %s279
          %s281 = smul.addr %s275, 64
          %s282 = sadd.s32 %s277, %s281
          %s283 = smul.addr %s282, 128
          %s284 = scalar_lea.hbm %s4, %s283
          %s285 = sshll.u32 %s267, 4
          %s286 = int_to_ptr.vmem [resolvable:$true] %s285
          %291 = dma.hbm_to_vmem [thread:$0]  %s284, 8192, %s286, %s264, 512, 512, 32
        $region24: #{tpu_custom_call.1} parent=19 // pred_fallthru
          _
        // Predicated region
        $region25: #{tpu_custom_call.1} parent=19 // pred_check
          %p292 = pneg %p149
        $region26: #{tpu_custom_call.1} parent=19 // pred_check_branch
          %294 = sbr.rel (%p292) target = $region28
        $region27: #{tpu_custom_call.1} parent=19 // pred_region
          %s295 = sand.u32 %s25, 1
          %s296 = scalar_lea.sflag [#allocation11], %s295
          %s297 = sand.u32 %s139, 1
          %s298 = smul.addr %s297, 256
          %s299 = scalar_lea.vmem [#allocation12], %s298
          %s300 = sshra.s32 %s33, 7
          %s301 = sand.u32 %s33, 127
          %s302 = sadd.s32 %s300, %s32
          %s303 = smul.u32 %s302, 128
          %s304 = sshra.s32 %s33, 7
          %s305 = sand.u32 %s33, 127
          %s306 = sadd.s32 %s303, %s305
          %s307 = sld [smem:[#allocation4 + %s306]]
          %s308 = sld [smem:[#allocation5 + %s306]]
          %s309 = smul.u32 32, %s308
          %s311 = ssub.s32 4096, 4096
          %312 = vsyncadd %s296, %s311
          %s313 = smul.addr %s307, 32
          %s314 = sadd.s32 %s309, %s313
          %s315 = smul.addr %s314, 128
          %s316 = scalar_lea.hbm %s5, %s315
          %s317 = sshll.u32 %s299, 4
          %s318 = int_to_ptr.vmem [resolvable:$true] %s317
          %323 = dma.hbm_to_vmem [thread:$0]  %s316, 4096, %s318, %s296, 128, 128, 8
        $region28: #{tpu_custom_call.1} parent=19 // pred_fallthru
          _
        // Predicated region
        $region29: #{tpu_custom_call.1} parent=19 // pred_check
          %p324 = pneg %p193
        $region30: #{tpu_custom_call.1} parent=19 // pred_check_branch
          %326 = sbr.rel (%p324) target = $region32
        $region31: #{tpu_custom_call.1} parent=19 // pred_region
          %s327 = sshra.s32 %s33, 7
          %s328 = sand.u32 %s33, 127
          %s329 = sadd.s32 %s327, %s32
          %s330 = smul.u32 %s329, 128
          %s331 = sshra.s32 %s33, 7
          %s332 = sand.u32 %s33, 127
          %s333 = sadd.s32 %s330, %s332
          %s334 = sld [smem:[#allocation4 + %s333]]
          %s335 = smul.u32 3, %s32
          %p336 = scmp.lt.s32.totalorder %s334, 7
          %s337 = scalar_select %p336, %s334, 7
          %p338 = scmp.lt.s32.totalorder %s335, 2
          %s339 = scalar_select %p338, %s335, 2
          %s340 = smul.addr %s337, 3
          %s341 = sadd.s32 %s339, %s340
          %s342 = smul.addr %s341, 8
          %s343 = scalar_lea.vmem %s6, %s342
          %s344 = sshra.s32 %s33, 7
          %s345 = sand.u32 %s33, 127
          %s346 = sadd.s32 %s344, %s32
          %s347 = smul.u32 %s346, 128
          %s348 = sshra.s32 %s33, 7
          %s349 = sand.u32 %s33, 127
          %s350 = sadd.s32 %s347, %s349
          %s351 = sld [smem:[#allocation4 + %s350]]
          %s352 = smul.u32 3, %s32
        $region32: #{tpu_custom_call.1} parent=19 // pred_fallthru
          _
      $region20: #{tpu_custom_call.1} parent=5 // pred_fallthru
        _
      %p353 = scmp.le.s32.totalorder 1, %s25
      %p354 = scmp.lt.s32.totalorder %s25, 9
      %p355 = pnand %p353, %p354
      %p356 = pneg %p355
      // Predicated region
      $region33: #{tpu_custom_call.1} parent=5 // pred_check
        _
      $region34: #{tpu_custom_call.1} parent=5 // pred_check_branch
        %358 = sbr.rel (%p355) target = $region36
      $region35: #{tpu_custom_call.1} parent=5 // pred_region
        %s359 = ssub.s32 %s25, 1
        // Predicated region
        $region37: #{tpu_custom_call.1} parent=35 // pred_check
          %p360 = pneg %p63
        $region38: #{tpu_custom_call.1} parent=35 // pred_check_branch
          %362 = sbr.rel (%p360) target = $region40
        $region39: #{tpu_custom_call.1} parent=35 // pred_region
          %363 = dma.done [#allocation8], 384
        $region40: #{tpu_custom_call.1} parent=35 // pred_fallthru
          _
        %s364 = sand.u32 %s30, 1
        %s365 = scalar_lea.sflag [#allocation11], %s364
        %s366 = sand.u32 %s96, 1
        %s367 = smul.addr %s366, 512
        %s368 = scalar_lea.vmem [#allocation10], %s367
        // Predicated region
        $region41: #{tpu_custom_call.1} parent=35 // pred_check
          %p369 = pneg %p109
        $region42: #{tpu_custom_call.1} parent=35 // pred_check_branch
          %371 = sbr.rel (%p369) target = $region44
        $region43: #{tpu_custom_call.1} parent=35 // pred_region
          %372 = dma.done %s365, 8192
        $region44: #{tpu_custom_call.1} parent=35 // pred_fallthru
          _
        %s373 = sand.u32 %s30, 1
        %s374 = scalar_lea.sflag [#allocation11], %s373
        %s375 = sand.u32 %s142, 1
        %s376 = smul.addr %s375, 256
        %s377 = scalar_lea.vmem [#allocation12], %s376
        // Predicated region
        $region45: #{tpu_custom_call.1} parent=35 // pred_check
          %p378 = pneg %p155
        $region46: #{tpu_custom_call.1} parent=35 // pred_check_branch
          %380 = sbr.rel (%p378) target = $region48
        $region47: #{tpu_custom_call.1} parent=35 // pred_region
          %381 = dma.done %s374, 4096
        $region48: #{tpu_custom_call.1} parent=35 // pred_fallthru
          _
        %p382 = pneg %p63
        %p383 = pneg %p60
        %s384 = sand.u32 %s30, 1
        %s385 = scalar_lea.sflag [#allocation11], %s384
        %s386 = sand.u32 %s96, 1
        %s387 = smul.addr %s386, 512
        %s388 = scalar_lea.vmem [#allocation10], %s387
        %p389 = pneg %p109
        %p390 = pneg %p106
        %s391 = sand.u32 %s30, 1
        %s392 = scalar_lea.sflag [#allocation11], %s391
        %s393 = sand.u32 %s142, 1
        %s394 = smul.addr %s393, 256
        %s395 = scalar_lea.vmem [#allocation12], %s394
        %p396 = pneg %p155
        %p397 = pneg %p152
        %s398 = sshra.s32 %s35, 7
        %s399 = sand.u32 %s35, 127
        %s400 = sadd.s32 %s398, %s34
        %s401 = smul.u32 %s400, 128
        %s402 = sshra.s32 %s35, 7
        %s403 = sand.u32 %s35, 127
        %s404 = sadd.s32 %s401, %s403
        %s405 = sld [smem:[#allocation4 + %s404]]
        %s406 = smul.u32 3, %s34
        %p407 = scmp.lt.s32.totalorder %s405, 7
        %s408 = scalar_select %p407, %s405, 7
        %p409 = scmp.lt.s32.totalorder %s406, 2
        %s410 = scalar_select %p409, %s406, 2
        %s411 = smul.addr %s408, 3
        %s412 = sadd.s32 %s410, %s411
        %s413 = smul.addr %s412, 8
        %s414 = scalar_lea.vmem %s6, %s413
        %p415 = pneg %p199
        %p416 = pneg %p196
        %p417 = pneg %p225
        %p418 = pneg %p222
        %s419 = smul.u32 3, %s34
        %s420 = sshra.s32 %s35, 7
        %s421 = sand.u32 %s35, 127
        %s422 = sadd.s32 %s420, %s34
        %s423 = smul.u32 %s422, 128
        %s424 = sshra.s32 %s35, 7
        %s425 = sand.u32 %s35, 127
        %s426 = sadd.s32 %s423, %s425
        %s427 = sld [smem:[#allocation4 + %s426]]
        %s428 = sld [smem:[#allocation5 + %s426]]
        %s429 = smul.u32 4, %s428
        %s430 = sshra.s32 %s35, 7
        %s431 = sand.u32 %s35, 127
        %s432 = sadd.s32 %s430, %s34
        %s433 = smul.u32 %s432, 128
        %s434 = sshra.s32 %s35, 7
        %s435 = sand.u32 %s35, 127
        %s436 = sadd.s32 %s433, %s435
        %s437 = sld [smem:[#allocation4 + %s436]]
        %s438 = sld [smem:[#allocation5 + %s436]]
        %s439 = smul.u32 32, %s438
        %s440 = sshra.s32 %s35, 7
        %s441 = sand.u32 %s35, 127
        %s442 = sadd.s32 %s440, %s34
        %s443 = smul.u32 %s442, 128
        %s444 = sshra.s32 %s35, 7
        %s445 = sand.u32 %s35, 127
        %s446 = sadd.s32 %s443, %s445
        %s447 = sld [smem:[#allocation4 + %s446]]
        %s448 = smul.u32 3, %s34
        %p449 = scmp.lt.s32.totalorder %s447, 7
        %s450 = scalar_select %p449, %s447, 7
        %p451 = scmp.lt.s32.totalorder %s448, 2
        %s452 = scalar_select %p451, %s448, 2
        %s453 = smul.addr %s450, 3
        %s454 = sadd.s32 %s452, %s453
        %s455 = smul.addr %s454, 8
        %s456 = scalar_lea.vmem %s6, %s455
        %s457 = sshra.s32 %s35, 7
        %s458 = sand.u32 %s35, 127
        %s459 = sadd.s32 %s457, %s34
        %s460 = smul.u32 %s459, 128
        %s461 = sshra.s32 %s35, 7
        %s462 = sand.u32 %s35, 127
        %s463 = sadd.s32 %s460, %s462
        %s464 = sld [smem:[#allocation4 + %s463]]
        %s465 = smul.u32 3, %s34
        %s466 = smul.u32 3, %s34
        %p467 = scmp.eq.s32.totalorder %s35, 0
        // Predicated region
        $region49: #{tpu_custom_call.1} parent=35 // pred_check
          %p468 = pneg %p467
        $region50: #{tpu_custom_call.1} parent=35 // pred_check_branch
          %470 = sbr.rel (%p468) target = $region52
        $region51: #{tpu_custom_call.1} parent=35 // pred_region
          %471 = vst [vmem:[#allocation2] sm:$0xff] 0.0
          %472 = vst [vmem:[#allocation2 + $0x8] sm:$0xff] 0.0
          %473 = vst [vmem:[#allocation2 + $0x10] sm:$0xff] 0.0
        $region52: #{tpu_custom_call.1} parent=35 // pred_fallthru
          _
        %s474 = sld [smem:[#allocation6 + %s34]]
        %p475 = scmp.lt.s32.totalorder %s35, %s474
        // Predicated region
        $region53: #{tpu_custom_call.1} parent=35 // pred_check
          %p476 = pneg %p475
        $region54: #{tpu_custom_call.1} parent=35 // pred_check_branch
          %478 = sbr.rel (%p476) target = $region56
        $region55: #{tpu_custom_call.1} parent=35 // pred_region
          %v479 = vld [vmem:[#allocation7] sm:$0xff]
          %v480 = vld [vmem:[#allocation7 + $0x8] sm:$0xff]
          %v481 = vld [vmem:[#allocation7 + $0x10] sm:$0xff]
          %v482 = vld [vmem:[%s368] sm:$0xff]
          %v483 = vld [vmem:[%s368 + $0x8] sm:$0xff]
          %v484 = vld [vmem:[%s368 + $0x10] sm:$0xff]
          %v485 = vld [vmem:[%s368 + $0x18] sm:$0xff]
          %v486 = vld [vmem:[%s368 + $0x20] sm:$0xff]
          %v487 = vld [vmem:[%s368 + $0x28] sm:$0xff]
          %v488 = vld [vmem:[%s368 + $0x30] sm:$0xff]
          %v489 = vld [vmem:[%s368 + $0x38] sm:$0xff]
          %v490 = vld [vmem:[%s368 + $0x40] sm:$0xff]
          %v491 = vld [vmem:[%s368 + $0x48] sm:$0xff]
          %v492 = vld [vmem:[%s368 + $0x50] sm:$0xff]
          %v493 = vld [vmem:[%s368 + $0x58] sm:$0xff]
          %v494 = vld [vmem:[%s368 + $0x60] sm:$0xff]
          %v495 = vld [vmem:[%s368 + $0x68] sm:$0xff]
          %v496 = vld [vmem:[%s368 + $0x70] sm:$0xff]
          %v497 = vld [vmem:[%s368 + $0x78] sm:$0xff]
          %v498 = vld [vmem:[%s368 + $0x80] sm:$0xff]
          %v499 = vld [vmem:[%s368 + $0x88] sm:$0xff]
          %v500 = vld [vmem:[%s368 + $0x90] sm:$0xff]
          %v501 = vld [vmem:[%s368 + $0x98] sm:$0xff]
          %v502 = vld [vmem:[%s368 + $0xa0] sm:$0xff]
          %v503 = vld [vmem:[%s368 + $0xa8] sm:$0xff]
          %v504 = vld [vmem:[%s368 + $0xb0] sm:$0xff]
          %v505 = vld [vmem:[%s368 + $0xb8] sm:$0xff]
          %v506 = vld [vmem:[%s368 + $0xc0] sm:$0xff]
          %v507 = vld [vmem:[%s368 + $0xc8] sm:$0xff]
          %v508 = vld [vmem:[%s368 + $0xd0] sm:$0xff]
          %v509 = vld [vmem:[%s368 + $0xd8] sm:$0xff]
          %v510 = vld [vmem:[%s368 + $0xe0] sm:$0xff]
          %v511 = vld [vmem:[%s368 + $0xe8] sm:$0xff]
          %v512 = vld [vmem:[%s368 + $0xf0] sm:$0xff]
          %v513 = vld [vmem:[%s368 + $0xf8] sm:$0xff]
          %v514 = vld [vmem:[%s368 + $0x100] sm:$0xff]
          %v515 = vld [vmem:[%s368 + $0x108] sm:$0xff]
          %v516 = vld [vmem:[%s368 + $0x110] sm:$0xff]
          %v517 = vld [vmem:[%s368 + $0x118] sm:$0xff]
          %v518 = vld [vmem:[%s368 + $0x120] sm:$0xff]
          %v519 = vld [vmem:[%s368 + $0x128] sm:$0xff]
          %v520 = vld [vmem:[%s368 + $0x130] sm:$0xff]
          %v521 = vld [vmem:[%s368 + $0x138] sm:$0xff]
          %v522 = vld [vmem:[%s368 + $0x140] sm:$0xff]
          %v523 = vld [vmem:[%s368 + $0x148] sm:$0xff]
          %v524 = vld [vmem:[%s368 + $0x150] sm:$0xff]
          %v525 = vld [vmem:[%s368 + $0x158] sm:$0xff]
          %v526 = vld [vmem:[%s368 + $0x160] sm:$0xff]
          %v527 = vld [vmem:[%s368 + $0x168] sm:$0xff]
          %v528 = vld [vmem:[%s368 + $0x170] sm:$0xff]
          %v529 = vld [vmem:[%s368 + $0x178] sm:$0xff]
          %v530 = vld [vmem:[%s368 + $0x180] sm:$0xff]
          %v531 = vld [vmem:[%s368 + $0x188] sm:$0xff]
          %v532 = vld [vmem:[%s368 + $0x190] sm:$0xff]
          %v533 = vld [vmem:[%s368 + $0x198] sm:$0xff]
          %v534 = vld [vmem:[%s368 + $0x1a0] sm:$0xff]
          %v535 = vld [vmem:[%s368 + $0x1a8] sm:$0xff]
          %v536 = vld [vmem:[%s368 + $0x1b0] sm:$0xff]
          %v537 = vld [vmem:[%s368 + $0x1b8] sm:$0xff]
          %v538 = vld [vmem:[%s368 + $0x1c0] sm:$0xff]
          %v539 = vld [vmem:[%s368 + $0x1c8] sm:$0xff]
          %v540 = vld [vmem:[%s368 + $0x1d0] sm:$0xff]
          %v541 = vld [vmem:[%s368 + $0x1d8] sm:$0xff]
          %v542 = vld [vmem:[%s368 + $0x1e0] sm:$0xff]
          %v543 = vld [vmem:[%s368 + $0x1e8] sm:$0xff]
          %v544 = vld [vmem:[%s368 + $0x1f0] sm:$0xff]
          %v545 = vld [vmem:[%s368 + $0x1f8] sm:$0xff]
          %546 = vmatprep.subr.mxu0 %v483
          %547 = vmatpush1.msra.mxu0 %v482
          %548 = vmatprep.subr.mxu0 %v487
          %549 = vmatpush1.msra.mxu0 %v486
          %550 = vmatprep.subr.mxu0 %v491
          %551 = vmatpush1.msra.mxu0 %v490
          %552 = vmatprep.subr.mxu0 %v495
          %553 = vmatpush1.msra.mxu0 %v494
          %554 = vmatprep.subr.mxu0 %v499
          %555 = vmatpush1.msra.mxu0 %v498
          %556 = vmatprep.subr.mxu0 %v503
          %557 = vmatpush1.msra.mxu0 %v502
          %558 = vmatprep.subr.mxu0 %v507
          %559 = vmatpush1.msra.mxu0 %v506
          %560 = vmatprep.subr.mxu0 %v511
          %561 = vmatpush1.msra.mxu0 %v510
          %562 = vmatprep.subr.mxu0 %v515
          %563 = vmatpush1.msra.mxu0 %v514
          %564 = vmatprep.subr.mxu0 %v519
          %565 = vmatpush1.msra.mxu0 %v518
          %566 = vmatprep.subr.mxu0 %v523
          %567 = vmatpush1.msra.mxu0 %v522
          %568 = vmatprep.subr.mxu0 %v527
          %569 = vmatpush1.msra.mxu0 %v526
          %570 = vmatprep.subr.mxu0 %v531
          %571 = vmatpush1.msra.mxu0 %v530
          %572 = vmatprep.subr.mxu0 %v535
          %573 = vmatpush1.msra.mxu0 %v534
          %574 = vmatprep.subr.mxu0 %v539
          %575 = vmatpush1.msra.mxu0 %v538
          %576 = vmatprep.subr.mxu0 %v543
          %577 = vmatpush1.msra.mxu0 %v542
          %578 = vmatprep.subr.mxu0 0.0
          %579 = vmatpush1.msra.mxu0 0.0
          %580 = vmatprep.subr.mxu0 0.0
          %581 = vmatpush1.msra.mxu0 0.0
          %582 = vmatprep.subr.mxu0 0.0
          %583 = vmatpush1.msra.mxu0 0.0
          %584 = vmatprep.subr.mxu0 0.0
          %585 = vmatpush1.msra.mxu0 0.0
          %586 = vmatprep.subr.mxu0 0.0
          %587 = vmatpush1.msra.mxu0 0.0
          %588 = vmatprep.subr.mxu0 0.0
          %589 = vmatpush1.msra.mxu0 0.0
          %590 = vmatprep.subr.mxu0 0.0
          %591 = vmatpush1.msra.mxu0 0.0
          %592 = vmatprep.subr.mxu0 0.0
          %593 = vmatpush1.msra.mxu0 0.0
          %594 = vmatprep.subr.mxu0 0.0
          %595 = vmatpush1.msra.mxu0 0.0
          %596 = vmatprep.subr.mxu0 0.0
          %597 = vmatpush1.msra.mxu0 0.0
          %598 = vmatprep.subr.mxu0 0.0
          %599 = vmatpush1.msra.mxu0 0.0
          %600 = vmatprep.subr.mxu0 0.0
          %601 = vmatpush1.msra.mxu0 0.0
          %602 = vmatprep.subr.mxu0 0.0
          %603 = vmatpush1.msra.mxu0 0.0
          %604 = vmatprep.subr.mxu0 0.0
          %605 = vmatpush1.msra.mxu0 0.0
          %606 = vmatprep.subr.mxu0 0.0
          %607 = vmatpush1.msra.mxu0 0.0
          %608 = vmatprep.subr.mxu0 0.0
          %609 = vmatpush1.msra.mxu0 0.0
          %610 = vmatprep.mubr.f32.mxu0 0.0
          %611 = vmatmul.mubr.f32.gmra.mrb[0].mxu0 %v479
          %v612 = vpop.f32.mrb[0].mxu0
          %v613 = vadd.f32 0.0, %v612
          %v614 = vpop.f32.mrb[0].mxu0
          %v615 = vadd.f32 0.0, %v614
          %616 = vmatprep.mubr.f32.mxu0 0.0
          %617 = vmatmul.mubr.f32.gmra.mrb[0].mxu0 %v480
          %v618 = vpop.f32.mrb[0].mxu0
          %v619 = vadd.f32 0.0, %v618
          %v620 = vpop.f32.mrb[0].mxu0
          %v621 = vadd.f32 0.0, %v620
          %622 = vmatprep.mubr.f32.mxu0 0.0
          %623 = vmatmul.mubr.f32.gmra.mrb[0].mxu0 %v481
          %v624 = vpop.f32.mrb[0].mxu0
          %v625 = vadd.f32 0.0, %v624
          %v626 = vpop.f32.mrb[0].mxu0
          %v627 = vadd.f32 0.0, %v626
          %628 = vdwg.mxu0
          %629 = vmatprep.subr.mxu0 %v485
          %630 = vmatpush1.msra.mxu0 %v484
          %631 = vmatprep.subr.mxu0 %v489
          %632 = vmatpush1.msra.mxu0 %v488
          %633 = vmatprep.subr.mxu0 %v493
          %634 = vmatpush1.msra.mxu0 %v492
          %635 = vmatprep.subr.mxu0 %v497
          %636 = vmatpush1.msra.mxu0 %v496
          %637 = vmatprep.subr.mxu0 %v501
          %638 = vmatpush1.msra.mxu0 %v500
          %639 = vmatprep.subr.mxu0 %v505
          %640 = vmatpush1.msra.mxu0 %v504
          %641 = vmatprep.subr.mxu0 %v509
          %642 = vmatpush1.msra.mxu0 %v508
          %643 = vmatprep.subr.mxu0 %v513
          %644 = vmatpush1.msra.mxu0 %v512
          %645 = vmatprep.subr.mxu0 %v517
          %646 = vmatpush1.msra.mxu0 %v516
          %647 = vmatprep.subr.mxu0 %v521
          %648 = vmatpush1.msra.mxu0 %v520
          %649 = vmatprep.subr.mxu0 %v525
          %650 = vmatpush1.msra.mxu0 %v524
          %651 = vmatprep.subr.mxu0 %v529
          %652 = vmatpush1.msra.mxu0 %v528
          %653 = vmatprep.subr.mxu0 %v533
          %654 = vmatpush1.msra.mxu0 %v532
          %655 = vmatprep.subr.mxu0 %v537
          %656 = vmatpush1.msra.mxu0 %v536
          %657 = vmatprep.subr.mxu0 %v541
          %658 = vmatpush1.msra.mxu0 %v540
          %659 = vmatprep.subr.mxu0 %v545
          %660 = vmatpush1.msra.mxu0 %v544
          %661 = vmatprep.subr.mxu0 0.0
          %662 = vmatpush1.msra.mxu0 0.0
          %663 = vmatprep.subr.mxu0 0.0
          %664 = vmatpush1.msra.mxu0 0.0
          %665 = vmatprep.subr.mxu0 0.0
          %666 = vmatpush1.msra.mxu0 0.0
          %667 = vmatprep.subr.mxu0 0.0
          %668 = vmatpush1.msra.mxu0 0.0
          %669 = vmatprep.subr.mxu0 0.0
          %670 = vmatpush1.msra.mxu0 0.0
          %671 = vmatprep.subr.mxu0 0.0
          %672 = vmatpush1.msra.mxu0 0.0
          %673 = vmatprep.subr.mxu0 0.0
          %674 = vmatpush1.msra.mxu0 0.0
          %675 = vmatprep.subr.mxu0 0.0
          %676 = vmatpush1.msra.mxu0 0.0
          %677 = vmatprep.subr.mxu0 0.0
          %678 = vmatpush1.msra.mxu0 0.0
          %679 = vmatprep.subr.mxu0 0.0
          %680 = vmatpush1.msra.mxu0 0.0
          %681 = vmatprep.subr.mxu0 0.0
          %682 = vmatpush1.msra.mxu0 0.0
          %683 = vmatprep.subr.mxu0 0.0
          %684 = vmatpush1.msra.mxu0 0.0
          %685 = vmatprep.subr.mxu0 0.0
          %686 = vmatpush1.msra.mxu0 0.0
          %687 = vmatprep.subr.mxu0 0.0
          %688 = vmatpush1.msra.mxu0 0.0
          %689 = vmatprep.subr.mxu0 0.0
          %690 = vmatpush1.msra.mxu0 0.0
          %691 = vmatprep.subr.mxu0 0.0
          %692 = vmatpush1.msra.mxu0 0.0
          %693 = vmatprep.mubr.f32.mxu0 0.0
          %694 = vmatmul.mubr.f32.gmra.mrb[0].mxu0 %v479
          %v695 = vpop.f32.mrb[0].mxu0
          %v696 = vadd.f32 0.0, %v695
          %v697 = vpop.f32.mrb[0].mxu0
          %v698 = vadd.f32 0.0, %v697
          %699 = vmatprep.mubr.f32.mxu0 0.0
          %700 = vmatmul.mubr.f32.gmra.mrb[0].mxu0 %v480
          %v701 = vpop.f32.mrb[0].mxu0
          %v702 = vadd.f32 0.0, %v701
          %v703 = vpop.f32.mrb[0].mxu0
          %v704 = vadd.f32 0.0, %v703
          %705 = vmatprep.mubr.f32.mxu0 0.0
          %706 = vmatmul.mubr.f32.gmra.mrb[0].mxu0 %v481
          %v707 = vpop.f32.mrb[0].mxu0
          %v708 = vadd.f32 0.0, %v707
          %v709 = vpop.f32.mrb[0].mxu0
          %v710 = vadd.f32 0.0, %v709
          %711 = vdwg.mxu0
          %v712 = vxor.u32 %v613, 2147483648
          %v713 = vxor.u32 %v615, 2147483648
          %v714 = vxor.u32 %v619, 2147483648
          %v715 = vxor.u32 %v621, 2147483648
          %v716 = vxor.u32 %v625, 2147483648
          %v717 = vxor.u32 %v627, 2147483648
          %v718 = vmul.f32 %v712, 1.442695
          %v719 = vpow.pop %v718
          %v720 = vmul.f32 %v713, 1.442695
          %v721 = vpow.pop %v720
          %v722 = vmul.f32 %v714, 1.442695
          %v723 = vpow.pop %v722
          %v724 = vmul.f32 %v715, 1.442695
          %v725 = vpow.pop %v724
          %v726 = vmul.f32 %v716, 1.442695
          %v727 = vpow.pop %v726
          %v728 = vmul.f32 %v717, 1.442695
          %v729 = vpow.pop %v728
          %v730 = vadd.f32 %v719, 1.0
          %v731 = vadd.f32 %v721, 1.0
          %v732 = vadd.f32 %v723, 1.0
          %v733 = vadd.f32 %v725, 1.0
          %v734 = vadd.f32 %v727, 1.0
          %v735 = vadd.f32 %v729, 1.0
          %v736 = vrcp.pop %v730
          %v737 = vmul.f32 1.0, %v736
          %v738 = vrcp.pop %v731
          %v739 = vmul.f32 1.0, %v738
          %v740 = vrcp.pop %v732
          %v741 = vmul.f32 1.0, %v740
          %v742 = vrcp.pop %v733
          %v743 = vmul.f32 1.0, %v742
          %v744 = vrcp.pop %v734
          %v745 = vmul.f32 1.0, %v744
          %v746 = vrcp.pop %v735
          %v747 = vmul.f32 1.0, %v746
          %v748 = vmul.f32 %v613, %v737
          %v749 = vmul.f32 %v615, %v739
          %v750 = vmul.f32 %v619, %v741
          %v751 = vmul.f32 %v621, %v743
          %v752 = vmul.f32 %v625, %v745
          %v753 = vmul.f32 %v627, %v747
          %v754 = vmul.f32 %v748, %v696
          %v755 = vmul.f32 %v749, %v698
          %v756 = vmul.f32 %v750, %v702
          %v757 = vmul.f32 %v751, %v704
          %v758 = vmul.f32 %v752, %v708
          %v759 = vmul.f32 %v753, %v710
          %v760 = vld [vmem:[%s456] sm:$0xff]
          %v761 = vld [vmem:[%s456 + $0x8] sm:$0xff]
          %v762 = vld [vmem:[%s456 + $0x10] sm:$0xff]
          %764 = vset.pattern.permute.xlu0 0
          %765 = vperm.xlu0 %764, %v760
          %v766 = vpop.permute.xlu0 %765
          %769 = vset.pattern.permute.xlu0 0
          %770 = vperm.xlu0 %769, %v761
          %v771 = vpop.permute.xlu0 %770
          %774 = vset.pattern.permute.xlu0 0
          %775 = vperm.xlu0 %774, %v762
          %v776 = vpop.permute.xlu0 %775
          %v778 = vmul.f32 %v754, %v766
          %v779 = vmul.f32 %v755, %v766
          %v780 = vmul.f32 %v756, %v771
          %v781 = vmul.f32 %v757, %v771
          %v782 = vmul.f32 %v758, %v776
          %v783 = vmul.f32 %v759, %v776
          %v784 = vld [vmem:[#allocation2] sm:$0xff]
          %v785 = vld [vmem:[#allocation2 + $0x8] sm:$0xff]
          %v786 = vld [vmem:[#allocation2 + $0x10] sm:$0xff]
          %v787 = vld [vmem:[%s377] sm:$0xff]
          %v788 = vld [vmem:[%s377 + $0x8] sm:$0xff]
          %v789 = vld [vmem:[%s377 + $0x10] sm:$0xff]
          %v790 = vld [vmem:[%s377 + $0x18] sm:$0xff]
          %v791 = vld [vmem:[%s377 + $0x20] sm:$0xff]
          %v792 = vld [vmem:[%s377 + $0x28] sm:$0xff]
          %v793 = vld [vmem:[%s377 + $0x30] sm:$0xff]
          %v794 = vld [vmem:[%s377 + $0x38] sm:$0xff]
          %v795 = vld [vmem:[%s377 + $0x40] sm:$0xff]
          %v796 = vld [vmem:[%s377 + $0x48] sm:$0xff]
          %v797 = vld [vmem:[%s377 + $0x50] sm:$0xff]
          %v798 = vld [vmem:[%s377 + $0x58] sm:$0xff]
          %v799 = vld [vmem:[%s377 + $0x60] sm:$0xff]
          %v800 = vld [vmem:[%s377 + $0x68] sm:$0xff]
          %v801 = vld [vmem:[%s377 + $0x70] sm:$0xff]
          %v802 = vld [vmem:[%s377 + $0x78] sm:$0xff]
          %v803 = vld [vmem:[%s377 + $0x80] sm:$0xff]
          %v804 = vld [vmem:[%s377 + $0x88] sm:$0xff]
          %v805 = vld [vmem:[%s377 + $0x90] sm:$0xff]
          %v806 = vld [vmem:[%s377 + $0x98] sm:$0xff]
          %v807 = vld [vmem:[%s377 + $0xa0] sm:$0xff]
          %v808 = vld [vmem:[%s377 + $0xa8] sm:$0xff]
          %v809 = vld [vmem:[%s377 + $0xb0] sm:$0xff]
          %v810 = vld [vmem:[%s377 + $0xb8] sm:$0xff]
          %v811 = vld [vmem:[%s377 + $0xc0] sm:$0xff]
          %v812 = vld [vmem:[%s377 + $0xc8] sm:$0xff]
          %v813 = vld [vmem:[%s377 + $0xd0] sm:$0xff]
          %v814 = vld [vmem:[%s377 + $0xd8] sm:$0xff]
          %v815 = vld [vmem:[%s377 + $0xe0] sm:$0xff]
          %v816 = vld [vmem:[%s377 + $0xe8] sm:$0xff]
          %v817 = vld [vmem:[%s377 + $0xf0] sm:$0xff]
          %v818 = vld [vmem:[%s377 + $0xf8] sm:$0xff]
          %819 = vmatprep.subr.mxu0 0.0
          %820 = vmatpush1.msra.mxu0 %v787
          %821 = vmatprep.subr.mxu0 0.0
          %822 = vmatpush1.msra.mxu0 %v788
          %823 = vmatprep.subr.mxu0 0.0
          %824 = vmatpush1.msra.mxu0 %v789
          %825 = vmatprep.subr.mxu0 0.0
          %826 = vmatpush1.msra.mxu0 %v790
          %827 = vmatprep.subr.mxu0 0.0
          %828 = vmatpush1.msra.mxu0 %v791
          %829 = vmatprep.subr.mxu0 0.0
          %830 = vmatpush1.msra.mxu0 %v792
          %831 = vmatprep.subr.mxu0 0.0
          %832 = vmatpush1.msra.mxu0 %v793
          %833 = vmatprep.subr.mxu0 0.0
          %834 = vmatpush1.msra.mxu0 %v794
          %835 = vmatprep.subr.mxu0 0.0
          %836 = vmatpush1.msra.mxu0 %v795
          %837 = vmatprep.subr.mxu0 0.0
          %838 = vmatpush1.msra.mxu0 %v796
          %839 = vmatprep.subr.mxu0 0.0
          %840 = vmatpush1.msra.mxu0 %v797
          %841 = vmatprep.subr.mxu0 0.0
          %842 = vmatpush1.msra.mxu0 %v798
          %843 = vmatprep.subr.mxu0 0.0
          %844 = vmatpush1.msra.mxu0 %v799
          %845 = vmatprep.subr.mxu0 0.0
          %846 = vmatpush1.msra.mxu0 %v800
          %847 = vmatprep.subr.mxu0 0.0
          %848 = vmatpush1.msra.mxu0 %v801
          %849 = vmatprep.subr.mxu0 0.0
          %850 = vmatpush1.msra.mxu0 %v802
          %851 = vmatprep.subr.mxu0 0.0
          %852 = vmatpush1.msra.mxu0 %v803
          %853 = vmatprep.subr.mxu0 0.0
          %854 = vmatpush1.msra.mxu0 %v804
          %855 = vmatprep.subr.mxu0 0.0
          %856 = vmatpush1.msra.mxu0 %v805
          %857 = vmatprep.subr.mxu0 0.0
          %858 = vmatpush1.msra.mxu0 %v806
          %859 = vmatprep.subr.mxu0 0.0
          %860 = vmatpush1.msra.mxu0 %v807
          %861 = vmatprep.subr.mxu0 0.0
          %862 = vmatpush1.msra.mxu0 %v808
          %863 = vmatprep.subr.mxu0 0.0
          %864 = vmatpush1.msra.mxu0 %v809
          %865 = vmatprep.subr.mxu0 0.0
          %866 = vmatpush1.msra.mxu0 %v810
          %867 = vmatprep.subr.mxu0 0.0
          %868 = vmatpush1.msra.mxu0 %v811
          %869 = vmatprep.subr.mxu0 0.0
          %870 = vmatpush1.msra.mxu0 %v812
          %871 = vmatprep.subr.mxu0 0.0
          %872 = vmatpush1.msra.mxu0 %v813
          %873 = vmatprep.subr.mxu0 0.0
          %874 = vmatpush1.msra.mxu0 %v814
          %875 = vmatprep.subr.mxu0 0.0
          %876 = vmatpush1.msra.mxu0 %v815
          %877 = vmatprep.subr.mxu0 0.0
          %878 = vmatpush1.msra.mxu0 %v816
          %879 = vmatprep.subr.mxu0 0.0
          %880 = vmatpush1.msra.mxu0 %v817
          %881 = vmatprep.subr.mxu0 0.0
          %882 = vmatpush1.msra.mxu0 %v818
          %883 = vmatprep.mubr.f32.mxu0 %v779
          %884 = vmatmul.mubr.f32.gmra.mrb[0].mxu0 %v778
          %v885 = vpop.f32.mrb[0].mxu0
          %v886 = vadd.f32 0.0, %v885
          %v887 = vpop.f32.mrb[0].mxu0
          %888 = vmatprep.mubr.f32.mxu0 %v781
          %889 = vmatmul.mubr.f32.gmra.mrb[0].mxu0 %v780
          %v890 = vpop.f32.mrb[0].mxu0
          %v891 = vadd.f32 0.0, %v890
          %v892 = vpop.f32.mrb[0].mxu0
          %893 = vmatprep.mubr.f32.mxu0 %v783
          %894 = vmatmul.mubr.f32.gmra.mrb[0].mxu0 %v782
          %v895 = vpop.f32.mrb[0].mxu0
          %v896 = vadd.f32 0.0, %v895
          %v897 = vpop.f32.mrb[0].mxu0
          %898 = vdwg.mxu0
          %v899 = vadd.f32 %v784, %v886
          %v900 = vadd.f32 %v785, %v891
          %v901 = vadd.f32 %v786, %v896
          %902 = vst [vmem:[#allocation2] sm:$0xff] %v899
          %903 = vst [vmem:[#allocation2 + $0x8] sm:$0xff] %v900
          %904 = vst [vmem:[#allocation2 + $0x10] sm:$0xff] %v901
        $region56: #{tpu_custom_call.1} parent=35 // pred_fallthru
          _
        %p905 = scmp.eq.s32.totalorder %s35, 7
        // Predicated region
        $region57: #{tpu_custom_call.1} parent=35 // pred_check
          %p906 = pneg %p905
        $region58: #{tpu_custom_call.1} parent=35 // pred_check_branch
          %908 = sbr.rel (%p906) target = $region60
        $region59: #{tpu_custom_call.1} parent=35 // pred_region
          %v909 = vld [vmem:[#allocation2] sm:$0xff]
          %v910 = vld [vmem:[#allocation2 + $0x8] sm:$0xff]
          %v911 = vld [vmem:[#allocation2 + $0x10] sm:$0xff]
          %912 = vst [vmem:[#allocation13] sm:$0xff] %v909
          %913 = vst [vmem:[#allocation13 + $0x8] sm:$0xff] %v910
          %914 = vst [vmem:[#allocation13 + $0x10] sm:$0xff] %v911
        $region60: #{tpu_custom_call.1} parent=35 // pred_fallthru
          _
        // Predicated region
        $region61: #{tpu_custom_call.1} parent=35 // pred_check
          %p915 = pneg %p222
        $region62: #{tpu_custom_call.1} parent=35 // pred_check_branch
          %917 = sbr.rel (%p915) target = $region64
        $region63: #{tpu_custom_call.1} parent=35 // pred_region
          %s918 = smul.u32 3, %s34
          %s920 = ssub.s32 384, 384
          %921 = vsyncadd [#allocation9], %s920
          %s922 = smul.addr %s918, 128
          %s923 = scalar_lea.hbm %s7, %s922
          %s924 = sshll.u32 [#allocation13], 4
          %s925 = int_to_ptr.vmem [resolvable:$true] %s924
          %930 = dma.vmem_to_hbm [thread:$0]  %s925, 384, %s923, [#allocation9], 128, 128, 8
        $region64: #{tpu_custom_call.1} parent=35 // pred_fallthru
          _
        // Predicated region
        $region65: #{tpu_custom_call.1} parent=35 // pred_check
          %p931 = pneg %p222
        $region66: #{tpu_custom_call.1} parent=35 // pred_check_branch
          %933 = sbr.rel (%p931) target = $region68
        $region67: #{tpu_custom_call.1} parent=35 // pred_region
          %934 = dma.done [#allocation9], 384
        $region68: #{tpu_custom_call.1} parent=35 // pred_fallthru
          _
      $region36: #{tpu_custom_call.1} parent=5 // pred_fallthru
        _
      %p935 = scmp.le.s32.totalorder 2, %s25
      // Predicated region
      $region69: #{tpu_custom_call.1} parent=5 // pred_check
        %p936 = pneg %p935
      $region70: #{tpu_custom_call.1} parent=5 // pred_check_branch
        %938 = sbr.rel (%p936) target = $region72
      $region71: #{tpu_custom_call.1} parent=5 // pred_region
        %s939 = ssub.s32 %s25, 2
      $region72: #{tpu_custom_call.1} parent=5 // pred_fallthru
        _
    $region6: #{tpu_custom_call.1} parent=1 // loop_footer
      %s29 = sadd.s32 1, %s25
    $region7: #{tpu_custom_call.1} parent=1 // loop_footer_branch
      %24 = sbr.rel target = $region3
    $region8: #{tpu_custom_call.1} parent=1 // loop_exit
      _
    %940 = vsyncpa [#allocation8], 1
    %s941 = scalar_lea.sflag [#allocation8], 1
    %942 = vsyncpa %s941, 1
    %943 = vsyncpa [#allocation11], 1
    %s944 = scalar_lea.sflag [#allocation11], 1
    %945 = vsyncpa %s944, 1
    %946 = vsyncpa [#allocation9], 1
    %s947 = scalar_lea.sflag [#allocation9], 1
    %948 = vsyncpa %s947, 1

</llo_original>
